<compile_context>
chip_gen: v7x
topology: tpu7x:2x2x1
jax: 0.10.0
libtpu: 0.0.40
codegen_flags: <defaults>
</compile_context>

<pallas_src>
import numpy as np
import jax
import jax.numpy as jnp
from jax.experimental import pallas as pl
from jax.experimental.pallas import tpu as pltpu


# -----------------------------------------------------------------------------
# Host glue: persistent homology pairing (same algorithm as the reference).
# -----------------------------------------------------------------------------
class UnionFind:
    def __init__(self, n_vertices):
        self._parent = np.arange(n_vertices, dtype=int)

    def find(self, u):
        if self._parent[u] == u:
            return u
        self._parent[u] = self.find(self._parent[u])
        return self._parent[u]

    def merge(self, u, v):
        if u != v:
            self._parent[self.find(u)] = self.find(v)


def persistent_homology_pairs(matrix: np.ndarray):
    n_vertices = matrix.shape[0]
    uf = UnionFind(n_vertices)
    triu_indices = np.triu_indices_from(matrix)
    edge_weights = matrix[triu_indices]
    edge_indices = np.argsort(edge_weights, kind="stable")
    persistence_pairs = []
    for edge_index in edge_indices:
        u = triu_indices[0][edge_index]
        v = triu_indices[1][edge_index]
        younger = uf.find(u)
        older = uf.find(v)
        if younger == older:
            continue
        elif younger > older:
            uf.merge(v, u)
        else:
            uf.merge(u, v)
        persistence_pairs.append((u, v) if u < v else (v, u))
    return np.array(persistence_pairs), np.array([])


def count_matching_pairs(pairs1: np.ndarray, pairs2: np.ndarray) -> float:
    s1 = set(tuple(e) for e in pairs1)
    s2 = set(tuple(e) for e in pairs2)
    return float(len(s1.intersection(s2)))


# -----------------------------------------------------------------------------
# Pallas kernel: single invocation.
#   sig1[i] = D1[r1[i], c1[i]],  sig2[i] = D2[r2[i], c2[i]]
#   out     = sum_i (sig1[i] - sig2[i])^2
# Row gather via one-hot MXU matmul; column select via lane-iota compare +
# fused XLU lane reduce; final sublane reduce into the (1,1) output.
# -----------------------------------------------------------------------------
def _sig_error_kernel(r1_ref, c1_ref, r2_ref, c2_ref,   # (M,1) int32 in VMEM
                      d1_ref, d2_ref,                    # (N,N) f32 in VMEM
                      out_ref):                          # (1,1) f32
    m = r1_ref.shape[0]
    n = d1_ref.shape[-1]
    lane = jax.lax.broadcasted_iota(jnp.int32, (m, n), 1)

    # One-hot row selectors built on the VPU (exact 0/1 values).
    onehot1 = (lane == r1_ref[...]).astype(jnp.float32)   # (M, N)
    onehot2 = (lane == r2_ref[...]).astype(jnp.float32)

    # Row gather on the MXU: (M,N) @ (N,N) -> (M,N).  HIGHEST precision keeps
    # the gathered f32 distances bit-accurate.
    rows1 = jnp.dot(onehot1, d1_ref[...],
                    preferred_element_type=jnp.float32,
                    precision=jax.lax.Precision.HIGHEST)
    rows2 = jnp.dot(onehot2, d2_ref[...],
                    preferred_element_type=jnp.float32,
                    precision=jax.lax.Precision.HIGHEST)

    # Column select (VPU) + one fused cross-lane reduce (XLU) per signature.
    sig1 = jnp.sum(jnp.where(lane == c1_ref[...], rows1, 0.0),
                   axis=-1, keepdims=True)               # (M, 1)
    sig2 = jnp.sum(jnp.where(lane == c2_ref[...], rows2, 0.0),
                   axis=-1, keepdims=True)               # (M, 1)

    diff = sig1 - sig2
    out_ref[...] = jnp.sum(diff * diff, axis=0, keepdims=True)  # (1, 1)


def topological_sig_distance_pallas(distances1, distances2, pairs1, pairs2):
    """distances*: [N, N] float32 jax arrays; pairs*: [M, 2] int numpy arrays."""
    n = int(distances1.shape[0])
    # Complete-graph 0D persistence always yields N-1 pairs for both inputs
    # (the reference's elementwise (sig1 - sig2) implicitly requires this).
    assert pairs1.shape[0] == pairs2.shape[0], "signature lengths must match"
    m = int(pairs1.shape[0])

    r1 = jnp.asarray(pairs1[:, 0], dtype=jnp.int32).reshape(m, 1)
    c1 = jnp.asarray(pairs1[:, 1], dtype=jnp.int32).reshape(m, 1)
    r2 = jnp.asarray(pairs2[:, 0], dtype=jnp.int32).reshape(m, 1)
    c2 = jnp.asarray(pairs2[:, 1], dtype=jnp.int32).reshape(m, 1)

    d1 = distances1.astype(jnp.float32)
    d2 = distances2.astype(jnp.float32)

    cost = pl.CostEstimate(
        flops=int(4 * m * n * n + 6 * m * n),
        transcendentals=0,
        bytes_accessed=int(4 * (2 * n * n + 4 * m + 1)),
    )

    out = pl.pallas_call(
        _sig_error_kernel,
        out_shape=jax.ShapeDtypeStruct((1, 1), jnp.float32),
        grid=(1,),
        in_specs=[
            pl.BlockSpec((m, 1), lambda i: (0, 0)),
            pl.BlockSpec((m, 1), lambda i: (0, 0)),
            pl.BlockSpec((m, 1), lambda i: (0, 0)),
            pl.BlockSpec((m, 1), lambda i: (0, 0)),
            pl.BlockSpec((n, n), lambda i: (0, 0)),
            pl.BlockSpec((n, n), lambda i: (0, 0)),
        ],
        out_specs=pl.BlockSpec((1, 1), lambda i: (0, 0)),
        compiler_params=pltpu.CompilerParams(
            dimension_semantics=("arbitrary",)),
        cost_estimate=cost,
    )(r1, c1, r2, c2, d1, d2)
    return out[0, 0]


# -----------------------------------------------------------------------------
# Module-equivalent forward (match_edges=None, use_cycles=False)
# -----------------------------------------------------------------------------
def topological_signature_distance_forward(distances1, distances2):
    d1_np = np.asarray(jax.device_get(distances1), dtype=np.float64)
    d2_np = np.asarray(jax.device_get(distances2), dtype=np.float64)

    pairs1, _ = persistent_homology_pairs(d1_np)
    pairs2, _ = persistent_homology_pairs(d2_np)

    distance_components = {
        "metrics.matched_pairs_0D": count_matching_pairs(pairs1, pairs2)
    }
    distance = topological_sig_distance_pallas(distances1, distances2,
                                               pairs1, pairs2)
    return distance, distance_components


def _pairwise_distances(x):
    # Euclidean pairwise distance matrix [N, N]
    sq = jnp.sum(x * x, axis=-1)
    d2 = sq[:, None] + sq[None, :] - 2.0 * (x @ x.T)
    return jnp.sqrt(jnp.maximum(d2, 0.0))


if __name__ == "__main__":
    key = jax.random.PRNGKey(0)
    k1, k2 = jax.random.split(key)
    # Small latent point clouds -> pairwise distance matrices (the module's
    # actual inputs): 16 points in 8-d.
    x1 = jax.random.normal(k1, (16, 8), dtype=jnp.float32)
    x2 = jax.random.normal(k2, (16, 8), dtype=jnp.float32)
    distances1 = _pairwise_distances(x1)
    distances2 = _pairwise_distances(x2)

    dist, components = topological_signature_distance_forward(distances1,
                                                              distances2)
    dist = jax.block_until_ready(dist)

    # Lightweight correctness check against a pure-NumPy reference.
    d1_np = np.asarray(distances1)
    d2_np = np.asarray(distances2)
    p1, _ = persistent_homology_pairs(d1_np.astype(np.float64))
    p2, _ = persistent_homology_pairs(d2_np.astype(np.float64))
    sig1 = d1_np[p1[:, 0], p1[:, 1]]
    sig2 = d2_np[p2[:, 0], p2[:, 1]]
    ref = float(np.sum((sig1 - sig2) ** 2))
    assert abs(float(dist) - ref) < 1e-3 * max(1.0, abs(ref)), (float(dist), ref)

    print("KERNEL_OK")
</pallas_src>

<mosaic_0001>
module attributes {stable_mosaic.version = 11 : i64} {
  func.func @_sig_error_kernel(%arg0: i32, %arg1: memref<15x1xi32, #tpu.memory_space<vmem>>, %arg2: memref<15x1xi32, #tpu.memory_space<vmem>>, %arg3: memref<15x1xi32, #tpu.memory_space<vmem>>, %arg4: memref<15x1xi32, #tpu.memory_space<vmem>>, %arg5: memref<16x16xf32, #tpu.memory_space<vmem>>, %arg6: memref<16x16xf32, #tpu.memory_space<vmem>>, %arg7: memref<1x1xf32, #tpu.memory_space<vmem>>) attributes {dimension_semantics = [#tpu.dimension_semantics<arbitrary>], iteration_bounds = array<i64: 1>, scalar_prefetch = 0 : i64, scratch_operands = 0 : i64, tpu.core_type = #tpu.core_type<tc>, window_params = [{pipeline_mode = #tpu.pipeline_mode<synchronous>, transform_indices = @transform_0, window_bounds = array<i64: 15, 1>}, {pipeline_mode = #tpu.pipeline_mode<synchronous>, transform_indices = @transform_1, window_bounds = array<i64: 15, 1>}, {pipeline_mode = #tpu.pipeline_mode<synchronous>, transform_indices = @transform_2, window_bounds = array<i64: 15, 1>}, {pipeline_mode = #tpu.pipeline_mode<synchronous>, transform_indices = @transform_3, window_bounds = array<i64: 15, 1>}, {pipeline_mode = #tpu.pipeline_mode<synchronous>, transform_indices = @transform_4, window_bounds = array<i64: 16, 16>}, {pipeline_mode = #tpu.pipeline_mode<synchronous>, transform_indices = @transform_5, window_bounds = array<i64: 16, 16>}, {pipeline_mode = #tpu.pipeline_mode<synchronous>, transform_indices = @transform_6, window_bounds = array<i64: 1, 1>}]} {
    %0 = tpu.iota {dimensions = array<i32: 1>} : vector<15x16xi32>
    %c0 = arith.constant 0 : index
    %c0_0 = arith.constant 0 : index
    %1 = vector.load %arg1[%c0, %c0_0] : memref<15x1xi32, #tpu.memory_space<vmem>>, vector<15x1xi32>
    %2 = vector.broadcast %1 : vector<15x1xi32> to vector<15x16xi32>
    %3 = arith.cmpi eq, %0, %2 : vector<15x16xi32>
    %4 = arith.extui %3 : vector<15x16xi1> to vector<15x16xi32>
    %5 = arith.sitofp %4 : vector<15x16xi32> to vector<15x16xf32>
    %c0_1 = arith.constant 0 : index
    %c0_2 = arith.constant 0 : index
    %6 = vector.load %arg3[%c0_1, %c0_2] : memref<15x1xi32, #tpu.memory_space<vmem>>, vector<15x1xi32>
    %7 = vector.broadcast %6 : vector<15x1xi32> to vector<15x16xi32>
    %8 = arith.cmpi eq, %0, %7 : vector<15x16xi32>
    %9 = arith.extui %8 : vector<15x16xi1> to vector<15x16xi32>
    %10 = arith.sitofp %9 : vector<15x16xi32> to vector<15x16xf32>
    %c0_3 = arith.constant 0 : index
    %c0_4 = arith.constant 0 : index
    %11 = vector.load %arg5[%c0_3, %c0_4] : memref<16x16xf32, #tpu.memory_space<vmem>>, vector<16x16xf32>
    %cst = arith.constant dense<0.000000e+00> : vector<15x16xf32>
    %12 = tpu.matmul %5, %11, %cst {dimension_numbers = #tpu.dot_dimension_numbers<[1], [0], [0], [1], [0, 0, 1, 1], [], []>, precision = #tpu.contract_precision<fp32>} : vector<15x16xf32>, vector<16x16xf32>, vector<15x16xf32> -> vector<15x16xf32>
    %c0_5 = arith.constant 0 : index
    %c0_6 = arith.constant 0 : index
    %13 = vector.load %arg6[%c0_5, %c0_6] : memref<16x16xf32, #tpu.memory_space<vmem>>, vector<16x16xf32>
    %cst_7 = arith.constant dense<0.000000e+00> : vector<15x16xf32>
    %14 = tpu.matmul %10, %13, %cst_7 {dimension_numbers = #tpu.dot_dimension_numbers<[1], [0], [0], [1], [0, 0, 1, 1], [], []>, precision = #tpu.contract_precision<fp32>} : vector<15x16xf32>, vector<16x16xf32>, vector<15x16xf32> -> vector<15x16xf32>
    %c0_8 = arith.constant 0 : index
    %c0_9 = arith.constant 0 : index
    %15 = vector.load %arg2[%c0_8, %c0_9] : memref<15x1xi32, #tpu.memory_space<vmem>>, vector<15x1xi32>
    %16 = vector.broadcast %15 : vector<15x1xi32> to vector<15x16xi32>
    %17 = arith.cmpi eq, %0, %16 : vector<15x16xi32>
    %cst_10 = arith.constant 0.000000e+00 : f32
    %18 = vector.broadcast %cst_10 : f32 to vector<15x16xf32>
    %19 = arith.select %17, %12, %18 : vector<15x16xi1>, vector<15x16xf32>
    %cst_11 = arith.constant dense<0.000000e+00> : vector<15xf32>
    %20 = vector.multi_reduction <add>, %19, %cst_11 [1] : vector<15x16xf32> to vector<15xf32>
    %21 = vector.shape_cast %20 : vector<15xf32> to vector<15x1xf32>
    %c0_12 = arith.constant 0 : index
    %c0_13 = arith.constant 0 : index
    %22 = vector.load %arg4[%c0_12, %c0_13] : memref<15x1xi32, #tpu.memory_space<vmem>>, vector<15x1xi32>
    %23 = vector.broadcast %22 : vector<15x1xi32> to vector<15x16xi32>
    %24 = arith.cmpi eq, %0, %23 : vector<15x16xi32>
    %cst_14 = arith.constant 0.000000e+00 : f32
    %25 = vector.broadcast %cst_14 : f32 to vector<15x16xf32>
    %26 = arith.select %24, %14, %25 : vector<15x16xi1>, vector<15x16xf32>
    %cst_15 = arith.constant dense<0.000000e+00> : vector<15xf32>
    %27 = vector.multi_reduction <add>, %26, %cst_15 [1] : vector<15x16xf32> to vector<15xf32>
    %28 = vector.shape_cast %27 : vector<15xf32> to vector<15x1xf32>
    %29 = arith.subf %21, %28 : vector<15x1xf32>
    %30 = arith.mulf %29, %29 : vector<15x1xf32>
    %cst_16 = arith.constant dense<0.000000e+00> : vector<1xf32>
    %31 = vector.multi_reduction <add>, %30, %cst_16 [0] : vector<15x1xf32> to vector<1xf32>
    %32 = vector.shape_cast %31 : vector<1xf32> to vector<1x1xf32>
    %c0_17 = arith.constant 0 : index
    %c0_18 = arith.constant 0 : index
    %33 = vector.load %arg7[%c0_17, %c0_18] : memref<1x1xf32, #tpu.memory_space<vmem>>, vector<1x1xf32>
    tpu.vector_store %arg7[%c0_17, %c0_18], %32 {strides = array<i32>} : memref<1x1xf32, #tpu.memory_space<vmem>>, vector<1x1xf32>,
    return
  }
  func.func @transform_0(%arg0: i32) -> (i32, i32) {
    %c0_i32 = arith.constant 0 : i32
    %c0_i32_0 = arith.constant 0 : i32
    %c0_i32_1 = arith.constant 0 : i32
    return %c0_i32, %c0_i32_0 : i32, i32
  }
  func.func @transform_1(%arg0: i32) -> (i32, i32) {
    %c0_i32 = arith.constant 0 : i32
    %c0_i32_0 = arith.constant 0 : i32
    %c0_i32_1 = arith.constant 0 : i32
    return %c0_i32, %c0_i32_0 : i32, i32
  }
  func.func @transform_2(%arg0: i32) -> (i32, i32) {
    %c0_i32 = arith.constant 0 : i32
    %c0_i32_0 = arith.constant 0 : i32
    %c0_i32_1 = arith.constant 0 : i32
    return %c0_i32, %c0_i32_0 : i32, i32
  }
  func.func @transform_3(%arg0: i32) -> (i32, i32) {
    %c0_i32 = arith.constant 0 : i32
    %c0_i32_0 = arith.constant 0 : i32
    %c0_i32_1 = arith.constant 0 : i32
    return %c0_i32, %c0_i32_0 : i32, i32
  }
  func.func @transform_4(%arg0: i32) -> (i32, i32) {
    %c0_i32 = arith.constant 0 : i32
    %c0_i32_0 = arith.constant 0 : i32
    %c0_i32_1 = arith.constant 0 : i32
    return %c0_i32, %c0_i32_0 : i32, i32
  }
  func.func @transform_5(%arg0: i32) -> (i32, i32) {
    %c0_i32 = arith.constant 0 : i32
    %c0_i32_0 = arith.constant 0 : i32
    %c0_i32_1 = arith.constant 0 : i32
    return %c0_i32, %c0_i32_0 : i32, i32
  }
  func.func @transform_6(%arg0: i32) -> (i32, i32) {
    %c0_i32 = arith.constant 0 : i32
    %c0_i32_0 = arith.constant 0 : i32
    %c0_i32_1 = arith.constant 0 : i32
    return %c0_i32, %c0_i32_0 : i32, i32
  }
}

</mosaic_0001>

<llo_original>
// kernel: tpu_custom_call.1
$region0: #{tpu_custom_call.1}
  #allocation0 [shape = 'u32[]', space=smem, size = 0x4, offset = 0x4, fixed_abs, tag = 'smem constant byte address 0x4 - core index']
  #allocation1 [shape = 'u32[144,128]{1,0:T(1,128)}', space=vmem, size = 0x12000, scoped, tag = 'internal scratch']
  %s0 = inlined_call_operand.vmem [shape: s32[15,1], index: 0, kind: input, shape index: {}]
  %s1 = inlined_call_operand.vmem [shape: s32[15,1], index: 1, kind: input, shape index: {}]
  %s2 = inlined_call_operand.vmem [shape: s32[15,1], index: 2, kind: input, shape index: {}]
  %s3 = inlined_call_operand.vmem [shape: s32[15,1], index: 3, kind: input, shape index: {}]
  %s4 = inlined_call_operand.vmem [shape: f32[16,16], index: 4, kind: input, shape index: {}]
  %s5 = inlined_call_operand.vmem [shape: f32[16,16], index: 5, kind: input, shape index: {}]
  %s6 = inlined_call_operand.hbm [shape: f32[1,1], index: 6, kind: output, shape index: {}]
  %s7 = sld [smem:[#allocation0]]
  $region34: #{tpu_custom_call.1} parent=0
    _
  %s9 = ssub.s32 1, %s7
  %s10 = scalar_select 0, %s9, %s7
  $region1: #{tpu_custom_call.1} parent=0
    #allocation2 [shape = 'u8[512]{0}', space=vmem, size = 0x400, scoped, tag = 'output window, operand 0, single buffered']
    #allocation3 [shape = 's32[1]{0}', space=sflag, size = 0x4, scoped, tag = 'scoped memory for tpu_custom_call.1']
    %11 = vsyncpa [#allocation3], 0
    // Predicated region
    $region2: #{tpu_custom_call.1} parent=1 // pred_check
      _
    $region3: #{tpu_custom_call.1} parent=1 // pred_check_branch
      %13 = sbr.rel (0) target = $region5
    $region4: #{tpu_custom_call.1} parent=1 // pred_region
      _
    $region5: #{tpu_custom_call.1} parent=1 // pred_fallthru
      _
    // Predicated region
    $region6: #{tpu_custom_call.1} parent=1 // pred_check
      _
    $region7: #{tpu_custom_call.1} parent=1 // pred_check_branch
      %15 = sbr.rel (0) target = $region9
    $region8: #{tpu_custom_call.1} parent=1 // pred_region
      _
    $region9: #{tpu_custom_call.1} parent=1 // pred_fallthru
      _
    // Predicated region
    $region10: #{tpu_custom_call.1} parent=1 // pred_check
      _
    $region11: #{tpu_custom_call.1} parent=1 // pred_check_branch
      %17 = sbr.rel (0) target = $region13
    $region12: #{tpu_custom_call.1} parent=1 // pred_region
      _
    $region13: #{tpu_custom_call.1} parent=1 // pred_fallthru
      _
    // Predicated region
    $region14: #{tpu_custom_call.1} parent=1 // pred_check
      _
    $region15: #{tpu_custom_call.1} parent=1 // pred_check_branch
      %19 = sbr.rel (0) target = $region17
    $region16: #{tpu_custom_call.1} parent=1 // pred_region
      _
    $region17: #{tpu_custom_call.1} parent=1 // pred_fallthru
      _
    // Predicated region
    $region18: #{tpu_custom_call.1} parent=1 // pred_check
      _
    $region19: #{tpu_custom_call.1} parent=1 // pred_check_branch
      %21 = sbr.rel (0) target = $region21
    $region20: #{tpu_custom_call.1} parent=1 // pred_region
      _
    $region21: #{tpu_custom_call.1} parent=1 // pred_fallthru
      _
    // Predicated region
    $region22: #{tpu_custom_call.1} parent=1 // pred_check
      _
    $region23: #{tpu_custom_call.1} parent=1 // pred_check_branch
      %23 = sbr.rel (0) target = $region25
    $region24: #{tpu_custom_call.1} parent=1 // pred_region
      _
    $region25: #{tpu_custom_call.1} parent=1 // pred_fallthru
      _
    %v24 = vlaneseq
    %v25 = vand.u32 %v24, 127
    %v26 = vld [vmem:[%s0] sm:$0xff]
    %v27 = vld [vmem:[%s0 + $0x8] sm:$0x7f]
    %28 = vset.pattern.permute.xlu0 0
    %29 = vperm.xlu0 %28, %v26
    %v30 = vpop.permute.xlu0 %29
    %31 = vset.pattern.permute.xlu0 0
    %32 = vperm.xlu0 %31, %v27
    %v33 = vpop.permute.xlu0 %32
    %vm34 = vcmp.eq.s32.totalorder %v25, %v30
    %vm35 = vcmp.eq.s32.totalorder %v25, %v33
    %v36 = vsel %vm34, 1, 0
    %v37 = vsel %vm35, 1, 0
    %v38 = vcvt.s32.f32 %v36
    %v39 = vcvt.s32.f32 %v37
    %v40 = vld [vmem:[%s2] sm:$0xff]
    %v41 = vld [vmem:[%s2 + $0x8] sm:$0x7f]
    %42 = vset.pattern.permute.xlu0 0
    %43 = vperm.xlu0 %42, %v40
    %v44 = vpop.permute.xlu0 %43
    %45 = vset.pattern.permute.xlu0 0
    %46 = vperm.xlu0 %45, %v41
    %v47 = vpop.permute.xlu0 %46
    %vm48 = vcmp.eq.s32.totalorder %v25, %v44
    %vm49 = vcmp.eq.s32.totalorder %v25, %v47
    %v50 = vsel %vm48, 1, 0
    %v51 = vsel %vm49, 1, 0
    %v52 = vcvt.s32.f32 %v50
    %v53 = vcvt.s32.f32 %v51
    %v54 = vld [vmem:[%s4] sm:$0xff]
    %v55 = vld [vmem:[%s4 + $0x8] sm:$0xff]
    %vm56 = vcmask 130048
    %v58 = vsel %vm56, %v38, 0
    %v61 = vsel %vm56, %v39, 0
    %63 = vmatprep.subr.mxu0 0.0
    %v64 = vand.u32 %v54, 4294901760
    %65 = vmatpush1.msra.mxu0 %v64
    %66 = vmatprep.subr.mxu0 0.0
    %v67 = vand.u32 %v55, 4294901760
    %68 = vmatpush1.msra.mxu0 %v67
    %69 = vmatprep.subr.mxu0 0.0
    %70 = vmatpush1.msra.mxu0 0.0
    %71 = vmatprep.subr.mxu0 0.0
    %72 = vmatpush1.msra.mxu0 0.0
    %73 = vmatprep.subr.mxu0 0.0
    %74 = vmatpush1.msra.mxu0 0.0
    %75 = vmatprep.subr.mxu0 0.0
    %76 = vmatpush1.msra.mxu0 0.0
    %77 = vmatprep.subr.mxu0 0.0
    %78 = vmatpush1.msra.mxu0 0.0
    %79 = vmatprep.subr.mxu0 0.0
    %80 = vmatpush1.msra.mxu0 0.0
    %81 = vmatprep.subr.mxu0 0.0
    %82 = vmatpush1.msra.mxu0 0.0
    %83 = vmatprep.subr.mxu0 0.0
    %84 = vmatpush1.msra.mxu0 0.0
    %85 = vmatprep.subr.mxu0 0.0
    %86 = vmatpush1.msra.mxu0 0.0
    %87 = vmatprep.subr.mxu0 0.0
    %88 = vmatpush1.msra.mxu0 0.0
    %89 = vmatprep.subr.mxu0 0.0
    %90 = vmatpush1.msra.mxu0 0.0
    %91 = vmatprep.subr.mxu0 0.0
    %92 = vmatpush1.msra.mxu0 0.0
    %93 = vmatprep.subr.mxu0 0.0
    %94 = vmatpush1.msra.mxu0 0.0
    %95 = vmatprep.subr.mxu0 0.0
    %96 = vmatpush1.msra.mxu0 0.0
    %97 = vmatprep.subr.mxu0 0.0
    %98 = vmatpush1.msra.mxu0 0.0
    %99 = vmatprep.subr.mxu0 0.0
    %100 = vmatpush1.msra.mxu0 0.0
    %101 = vmatprep.subr.mxu0 0.0
    %102 = vmatpush1.msra.mxu0 0.0
    %103 = vmatprep.subr.mxu0 0.0
    %104 = vmatpush1.msra.mxu0 0.0
    %105 = vmatprep.subr.mxu0 0.0
    %106 = vmatpush1.msra.mxu0 0.0
    %107 = vmatprep.subr.mxu0 0.0
    %108 = vmatpush1.msra.mxu0 0.0
    %109 = vmatprep.subr.mxu0 0.0
    %110 = vmatpush1.msra.mxu0 0.0
    %111 = vmatprep.subr.mxu0 0.0
    %112 = vmatpush1.msra.mxu0 0.0
    %113 = vmatprep.subr.mxu0 0.0
    %114 = vmatpush1.msra.mxu0 0.0
    %115 = vmatprep.subr.mxu0 0.0
    %116 = vmatpush1.msra.mxu0 0.0
    %117 = vmatprep.subr.mxu0 0.0
    %118 = vmatpush1.msra.mxu0 0.0
    %119 = vmatprep.subr.mxu0 0.0
    %120 = vmatpush1.msra.mxu0 0.0
    %121 = vmatprep.subr.mxu0 0.0
    %122 = vmatpush1.msra.mxu0 0.0
    %123 = vmatprep.subr.mxu0 0.0
    %124 = vmatpush1.msra.mxu0 0.0
    %125 = vmatprep.subr.mxu0 0.0
    %126 = vmatpush1.msra.mxu0 0.0
    %127 = vmatprep.subr.mxu0 0.0
    %128 = vmatpush1.msra.mxu0 0.0
    %129 = vmatprep.mubr.f32.mxu0 0.0
    %v130 = vand.u32 %v58, 4294901760
    %v131 = vsub.f32 %v58, %v130
    %v132 = vand.u32 %v131, 4294901760
    %v133 = vsub.f32 %v131, %v132
    %v134 = vand.u32 %v133, 4294901760
    %135 = vmatmul.mubr.f32.gmra.mrb[0].mxu0 %v134
    %v136 = vpop.f32.mrb[0].mxu0
    %v137 = vadd.f32 0.0, %v136
    %v138 = vpop.f32.mrb[0].mxu0
    %139 = vmatprep.mubr.f32.mxu0 0.0
    %v140 = vand.u32 %v61, 4294901760
    %v141 = vsub.f32 %v61, %v140
    %v142 = vand.u32 %v141, 4294901760
    %v143 = vsub.f32 %v141, %v142
    %v144 = vand.u32 %v143, 4294901760
    %145 = vmatmul.mubr.f32.gmra.mrb[0].mxu0 %v144
    %v146 = vpop.f32.mrb[0].mxu0
    %v147 = vadd.f32 0.0, %v146
    %v148 = vpop.f32.mrb[0].mxu0
    %149 = vdwg.mxu0
    %150 = vmatprep.subr.mxu0 0.0
    %v151 = vand.u32 %v54, 4294901760
    %v152 = vsub.f32 %v54, %v151
    %v153 = vand.u32 %v152, 4294901760
    %v154 = vsub.f32 %v152, %v153
    %v155 = vand.u32 %v154, 4294901760
    %156 = vmatpush1.msra.mxu0 %v155
    %157 = vmatprep.subr.mxu0 0.0
    %v158 = vand.u32 %v55, 4294901760
    %v159 = vsub.f32 %v55, %v158
    %v160 = vand.u32 %v159, 4294901760
    %v161 = vsub.f32 %v159, %v160
    %v162 = vand.u32 %v161, 4294901760
    %163 = vmatpush1.msra.mxu0 %v162
    %164 = vmatprep.subr.mxu0 0.0
    %165 = vmatpush1.msra.mxu0 0.0
    %166 = vmatprep.subr.mxu0 0.0
    %167 = vmatpush1.msra.mxu0 0.0
    %168 = vmatprep.subr.mxu0 0.0
    %169 = vmatpush1.msra.mxu0 0.0
    %170 = vmatprep.subr.mxu0 0.0
    %171 = vmatpush1.msra.mxu0 0.0
    %172 = vmatprep.subr.mxu0 0.0
    %173 = vmatpush1.msra.mxu0 0.0
    %174 = vmatprep.subr.mxu0 0.0
    %175 = vmatpush1.msra.mxu0 0.0
    %176 = vmatprep.subr.mxu0 0.0
    %177 = vmatpush1.msra.mxu0 0.0
    %178 = vmatprep.subr.mxu0 0.0
    %179 = vmatpush1.msra.mxu0 0.0
    %180 = vmatprep.subr.mxu0 0.0
    %181 = vmatpush1.msra.mxu0 0.0
    %182 = vmatprep.subr.mxu0 0.0
    %183 = vmatpush1.msra.mxu0 0.0
    %184 = vmatprep.subr.mxu0 0.0
    %185 = vmatpush1.msra.mxu0 0.0
    %186 = vmatprep.subr.mxu0 0.0
    %187 = vmatpush1.msra.mxu0 0.0
    %188 = vmatprep.subr.mxu0 0.0
    %189 = vmatpush1.msra.mxu0 0.0
    %190 = vmatprep.subr.mxu0 0.0
    %191 = vmatpush1.msra.mxu0 0.0
    %192 = vmatprep.subr.mxu0 0.0
    %193 = vmatpush1.msra.mxu0 0.0
    %194 = vmatprep.subr.mxu0 0.0
    %195 = vmatpush1.msra.mxu0 0.0
    %196 = vmatprep.subr.mxu0 0.0
    %197 = vmatpush1.msra.mxu0 0.0
    %198 = vmatprep.subr.mxu0 0.0
    %199 = vmatpush1.msra.mxu0 0.0
    %200 = vmatprep.subr.mxu0 0.0
    %201 = vmatpush1.msra.mxu0 0.0
    %202 = vmatprep.subr.mxu0 0.0
    %203 = vmatpush1.msra.mxu0 0.0
    %204 = vmatprep.subr.mxu0 0.0
    %205 = vmatpush1.msra.mxu0 0.0
    %206 = vmatprep.subr.mxu0 0.0
    %207 = vmatpush1.msra.mxu0 0.0
    %208 = vmatprep.subr.mxu0 0.0
    %209 = vmatpush1.msra.mxu0 0.0
    %210 = vmatprep.subr.mxu0 0.0
    %211 = vmatpush1.msra.mxu0 0.0
    %212 = vmatprep.subr.mxu0 0.0
    %213 = vmatpush1.msra.mxu0 0.0
    %214 = vmatprep.subr.mxu0 0.0
    %215 = vmatpush1.msra.mxu0 0.0
    %216 = vmatprep.subr.mxu0 0.0
    %217 = vmatpush1.msra.mxu0 0.0
    %218 = vmatprep.subr.mxu0 0.0
    %219 = vmatpush1.msra.mxu0 0.0
    %220 = vmatprep.subr.mxu0 0.0
    %221 = vmatpush1.msra.mxu0 0.0
    %222 = vmatprep.subr.mxu0 0.0
    %223 = vmatpush1.msra.mxu0 0.0
    %224 = vmatprep.mubr.f32.mxu0 0.0
    %v225 = vand.u32 %v58, 4294901760
    %226 = vmatmul.mubr.f32.gmra.mrb[0].mxu0 %v225
    %v227 = vpop.f32.mrb[0].mxu0
    %v228 = vadd.f32 %v137, %v227
    %v229 = vpop.f32.mrb[0].mxu0
    %230 = vmatprep.mubr.f32.mxu0 0.0
    %v231 = vand.u32 %v61, 4294901760
    %232 = vmatmul.mubr.f32.gmra.mrb[0].mxu0 %v231
    %v233 = vpop.f32.mrb[0].mxu0
    %v234 = vadd.f32 %v147, %v233
    %v235 = vpop.f32.mrb[0].mxu0
    %236 = vdwg.mxu0
    %237 = vmatprep.subr.mxu0 0.0
    %v238 = vand.u32 %v54, 4294901760
    %v239 = vsub.f32 %v54, %v238
    %240 = vmatpush1.msra.mxu0 %v239
    %241 = vmatprep.subr.mxu0 0.0
    %v242 = vand.u32 %v55, 4294901760
    %v243 = vsub.f32 %v55, %v242
    %244 = vmatpush1.msra.mxu0 %v243
    %245 = vmatprep.subr.mxu0 0.0
    %246 = vmatpush1.msra.mxu0 0.0
    %247 = vmatprep.subr.mxu0 0.0
    %248 = vmatpush1.msra.mxu0 0.0
    %249 = vmatprep.subr.mxu0 0.0
    %250 = vmatpush1.msra.mxu0 0.0
    %251 = vmatprep.subr.mxu0 0.0
    %252 = vmatpush1.msra.mxu0 0.0
    %253 = vmatprep.subr.mxu0 0.0
    %254 = vmatpush1.msra.mxu0 0.0
    %255 = vmatprep.subr.mxu0 0.0
    %256 = vmatpush1.msra.mxu0 0.0
    %257 = vmatprep.subr.mxu0 0.0
    %258 = vmatpush1.msra.mxu0 0.0
    %259 = vmatprep.subr.mxu0 0.0
    %260 = vmatpush1.msra.mxu0 0.0
    %261 = vmatprep.subr.mxu0 0.0
    %262 = vmatpush1.msra.mxu0 0.0
    %263 = vmatprep.subr.mxu0 0.0
    %264 = vmatpush1.msra.mxu0 0.0
    %265 = vmatprep.subr.mxu0 0.0
    %266 = vmatpush1.msra.mxu0 0.0
    %267 = vmatprep.subr.mxu0 0.0
    %268 = vmatpush1.msra.mxu0 0.0
    %269 = vmatprep.subr.mxu0 0.0
    %270 = vmatpush1.msra.mxu0 0.0
    %271 = vmatprep.subr.mxu0 0.0
    %272 = vmatpush1.msra.mxu0 0.0
    %273 = vmatprep.subr.mxu0 0.0
    %274 = vmatpush1.msra.mxu0 0.0
    %275 = vmatprep.subr.mxu0 0.0
    %276 = vmatpush1.msra.mxu0 0.0
    %277 = vmatprep.subr.mxu0 0.0
    %278 = vmatpush1.msra.mxu0 0.0
    %279 = vmatprep.subr.mxu0 0.0
    %280 = vmatpush1.msra.mxu0 0.0
    %281 = vmatprep.subr.mxu0 0.0
    %282 = vmatpush1.msra.mxu0 0.0
    %283 = vmatprep.subr.mxu0 0.0
    %284 = vmatpush1.msra.mxu0 0.0
    %285 = vmatprep.subr.mxu0 0.0
    %286 = vmatpush1.msra.mxu0 0.0
    %287 = vmatprep.subr.mxu0 0.0
    %288 = vmatpush1.msra.mxu0 0.0
    %289 = vmatprep.subr.mxu0 0.0
    %290 = vmatpush1.msra.mxu0 0.0
    %291 = vmatprep.subr.mxu0 0.0
    %292 = vmatpush1.msra.mxu0 0.0
    %293 = vmatprep.subr.mxu0 0.0
    %294 = vmatpush1.msra.mxu0 0.0
    %295 = vmatprep.subr.mxu0 0.0
    %296 = vmatpush1.msra.mxu0 0.0
    %297 = vmatprep.subr.mxu0 0.0
    %298 = vmatpush1.msra.mxu0 0.0
    %299 = vmatprep.subr.mxu0 0.0
    %300 = vmatpush1.msra.mxu0 0.0
    %301 = vmatprep.subr.mxu0 0.0
    %302 = vmatpush1.msra.mxu0 0.0
    %303 = vmatprep.subr.mxu0 0.0
    %304 = vmatpush1.msra.mxu0 0.0
    %305 = vmatprep.mubr.f32.mxu0 0.0
    %v306 = vand.u32 %v58, 4294901760
    %v307 = vsub.f32 %v58, %v306
    %308 = vmatmul.mubr.f32.gmra.mrb[0].mxu0 %v307
    %v309 = vpop.f32.mrb[0].mxu0
    %v310 = vadd.f32 %v228, %v309
    %v311 = vpop.f32.mrb[0].mxu0
    %312 = vmatprep.mubr.f32.mxu0 0.0
    %v313 = vand.u32 %v61, 4294901760
    %v314 = vsub.f32 %v61, %v313
    %315 = vmatmul.mubr.f32.gmra.mrb[0].mxu0 %v314
    %v316 = vpop.f32.mrb[0].mxu0
    %v317 = vadd.f32 %v234, %v316
    %v318 = vpop.f32.mrb[0].mxu0
    %319 = vdwg.mxu0
    %320 = vmatprep.subr.mxu0 0.0
    %v321 = vand.u32 %v54, 4294901760
    %322 = vmatpush1.msra.mxu0 %v321
    %323 = vmatprep.subr.mxu0 0.0
    %v324 = vand.u32 %v55, 4294901760
    %325 = vmatpush1.msra.mxu0 %v324
    %326 = vmatprep.subr.mxu0 0.0
    %327 = vmatpush1.msra.mxu0 0.0
    %328 = vmatprep.subr.mxu0 0.0
    %329 = vmatpush1.msra.mxu0 0.0
    %330 = vmatprep.subr.mxu0 0.0
    %331 = vmatpush1.msra.mxu0 0.0
    %332 = vmatprep.subr.mxu0 0.0
    %333 = vmatpush1.msra.mxu0 0.0
    %334 = vmatprep.subr.mxu0 0.0
    %335 = vmatpush1.msra.mxu0 0.0
    %336 = vmatprep.subr.mxu0 0.0
    %337 = vmatpush1.msra.mxu0 0.0
    %338 = vmatprep.subr.mxu0 0.0
    %339 = vmatpush1.msra.mxu0 0.0
    %340 = vmatprep.subr.mxu0 0.0
    %341 = vmatpush1.msra.mxu0 0.0
    %342 = vmatprep.subr.mxu0 0.0
    %343 = vmatpush1.msra.mxu0 0.0
    %344 = vmatprep.subr.mxu0 0.0
    %345 = vmatpush1.msra.mxu0 0.0
    %346 = vmatprep.subr.mxu0 0.0
    %347 = vmatpush1.msra.mxu0 0.0
    %348 = vmatprep.subr.mxu0 0.0
    %349 = vmatpush1.msra.mxu0 0.0
    %350 = vmatprep.subr.mxu0 0.0
    %351 = vmatpush1.msra.mxu0 0.0
    %352 = vmatprep.subr.mxu0 0.0
    %353 = vmatpush1.msra.mxu0 0.0
    %354 = vmatprep.subr.mxu0 0.0
    %355 = vmatpush1.msra.mxu0 0.0
    %356 = vmatprep.subr.mxu0 0.0
    %357 = vmatpush1.msra.mxu0 0.0
    %358 = vmatprep.subr.mxu0 0.0
    %359 = vmatpush1.msra.mxu0 0.0
    %360 = vmatprep.subr.mxu0 0.0
    %361 = vmatpush1.msra.mxu0 0.0
    %362 = vmatprep.subr.mxu0 0.0
    %363 = vmatpush1.msra.mxu0 0.0
    %364 = vmatprep.subr.mxu0 0.0
    %365 = vmatpush1.msra.mxu0 0.0
    %366 = vmatprep.subr.mxu0 0.0
    %367 = vmatpush1.msra.mxu0 0.0
    %368 = vmatprep.subr.mxu0 0.0
    %369 = vmatpush1.msra.mxu0 0.0
    %370 = vmatprep.subr.mxu0 0.0
    %371 = vmatpush1.msra.mxu0 0.0
    %372 = vmatprep.subr.mxu0 0.0
    %373 = vmatpush1.msra.mxu0 0.0
    %374 = vmatprep.subr.mxu0 0.0
    %375 = vmatpush1.msra.mxu0 0.0
    %376 = vmatprep.subr.mxu0 0.0
    %377 = vmatpush1.msra.mxu0 0.0
    %378 = vmatprep.subr.mxu0 0.0
    %379 = vmatpush1.msra.mxu0 0.0
    %380 = vmatprep.subr.mxu0 0.0
    %381 = vmatpush1.msra.mxu0 0.0
    %382 = vmatprep.subr.mxu0 0.0
    %383 = vmatpush1.msra.mxu0 0.0
    %384 = vmatprep.subr.mxu0 0.0
    %385 = vmatpush1.msra.mxu0 0.0
    %386 = vmatprep.mubr.f32.mxu0 0.0
    %v387 = vand.u32 %v58, 4294901760
    %v388 = vsub.f32 %v58, %v387
    %v389 = vand.u32 %v388, 4294901760
    %390 = vmatmul.mubr.f32.gmra.mrb[0].mxu0 %v389
    %v391 = vpop.f32.mrb[0].mxu0
    %v392 = vadd.f32 %v310, %v391
    %v393 = vpop.f32.mrb[0].mxu0
    %394 = vmatprep.mubr.f32.mxu0 0.0
    %v395 = vand.u32 %v61, 4294901760
    %v396 = vsub.f32 %v61, %v395
    %v397 = vand.u32 %v396, 4294901760
    %398 = vmatmul.mubr.f32.gmra.mrb[0].mxu0 %v397
    %v399 = vpop.f32.mrb[0].mxu0
    %v400 = vadd.f32 %v317, %v399
    %v401 = vpop.f32.mrb[0].mxu0
    %402 = vdwg.mxu0
    %403 = vmatprep.subr.mxu0 0.0
    %v404 = vand.u32 %v54, 4294901760
    %v405 = vsub.f32 %v54, %v404
    %v406 = vand.u32 %v405, 4294901760
    %407 = vmatpush1.msra.mxu0 %v406
    %408 = vmatprep.subr.mxu0 0.0
    %v409 = vand.u32 %v55, 4294901760
    %v410 = vsub.f32 %v55, %v409
    %v411 = vand.u32 %v410, 4294901760
    %412 = vmatpush1.msra.mxu0 %v411
    %413 = vmatprep.subr.mxu0 0.0
    %414 = vmatpush1.msra.mxu0 0.0
    %415 = vmatprep.subr.mxu0 0.0
    %416 = vmatpush1.msra.mxu0 0.0
    %417 = vmatprep.subr.mxu0 0.0
    %418 = vmatpush1.msra.mxu0 0.0
    %419 = vmatprep.subr.mxu0 0.0
    %420 = vmatpush1.msra.mxu0 0.0
    %421 = vmatprep.subr.mxu0 0.0
    %422 = vmatpush1.msra.mxu0 0.0
    %423 = vmatprep.subr.mxu0 0.0
    %424 = vmatpush1.msra.mxu0 0.0
    %425 = vmatprep.subr.mxu0 0.0
    %426 = vmatpush1.msra.mxu0 0.0
    %427 = vmatprep.subr.mxu0 0.0
    %428 = vmatpush1.msra.mxu0 0.0
    %429 = vmatprep.subr.mxu0 0.0
    %430 = vmatpush1.msra.mxu0 0.0
    %431 = vmatprep.subr.mxu0 0.0
    %432 = vmatpush1.msra.mxu0 0.0
    %433 = vmatprep.subr.mxu0 0.0
    %434 = vmatpush1.msra.mxu0 0.0
    %435 = vmatprep.subr.mxu0 0.0
    %436 = vmatpush1.msra.mxu0 0.0
    %437 = vmatprep.subr.mxu0 0.0
    %438 = vmatpush1.msra.mxu0 0.0
    %439 = vmatprep.subr.mxu0 0.0
    %440 = vmatpush1.msra.mxu0 0.0
    %441 = vmatprep.subr.mxu0 0.0
    %442 = vmatpush1.msra.mxu0 0.0
    %443 = vmatprep.subr.mxu0 0.0
    %444 = vmatpush1.msra.mxu0 0.0
    %445 = vmatprep.subr.mxu0 0.0
    %446 = vmatpush1.msra.mxu0 0.0
    %447 = vmatprep.subr.mxu0 0.0
    %448 = vmatpush1.msra.mxu0 0.0
    %449 = vmatprep.subr.mxu0 0.0
    %450 = vmatpush1.msra.mxu0 0.0
    %451 = vmatprep.subr.mxu0 0.0
    %452 = vmatpush1.msra.mxu0 0.0
    %453 = vmatprep.subr.mxu0 0.0
    %454 = vmatpush1.msra.mxu0 0.0
    %455 = vmatprep.subr.mxu0 0.0
    %456 = vmatpush1.msra.mxu0 0.0
    %457 = vmatprep.subr.mxu0 0.0
    %458 = vmatpush1.msra.mxu0 0.0
    %459 = vmatprep.subr.mxu0 0.0
    %460 = vmatpush1.msra.mxu0 0.0
    %461 = vmatprep.subr.mxu0 0.0
    %462 = vmatpush1.msra.mxu0 0.0
    %463 = vmatprep.subr.mxu0 0.0
    %464 = vmatpush1.msra.mxu0 0.0
    %465 = vmatprep.subr.mxu0 0.0
    %466 = vmatpush1.msra.mxu0 0.0
    %467 = vmatprep.subr.mxu0 0.0
    %468 = vmatpush1.msra.mxu0 0.0
    %469 = vmatprep.subr.mxu0 0.0
    %470 = vmatpush1.msra.mxu0 0.0
    %471 = vmatprep.subr.mxu0 0.0
    %472 = vmatpush1.msra.mxu0 0.0
    %473 = vmatprep.mubr.f32.mxu0 0.0
    %v474 = vand.u32 %v58, 4294901760
    %475 = vmatmul.mubr.f32.gmra.mrb[0].mxu0 %v474
    %v476 = vpop.f32.mrb[0].mxu0
    %v477 = vadd.f32 %v392, %v476
    %v478 = vpop.f32.mrb[0].mxu0
    %479 = vmatprep.mubr.f32.mxu0 0.0
    %v480 = vand.u32 %v61, 4294901760
    %481 = vmatmul.mubr.f32.gmra.mrb[0].mxu0 %v480
    %v482 = vpop.f32.mrb[0].mxu0
    %v483 = vadd.f32 %v400, %v482
    %v484 = vpop.f32.mrb[0].mxu0
    %485 = vdwg.mxu0
    %486 = vmatprep.subr.mxu0 0.0
    %v487 = vand.u32 %v54, 4294901760
    %488 = vmatpush1.msra.mxu0 %v487
    %489 = vmatprep.subr.mxu0 0.0
    %v490 = vand.u32 %v55, 4294901760
    %491 = vmatpush1.msra.mxu0 %v490
    %492 = vmatprep.subr.mxu0 0.0
    %493 = vmatpush1.msra.mxu0 0.0
    %494 = vmatprep.subr.mxu0 0.0
    %495 = vmatpush1.msra.mxu0 0.0
    %496 = vmatprep.subr.mxu0 0.0
    %497 = vmatpush1.msra.mxu0 0.0
    %498 = vmatprep.subr.mxu0 0.0
    %499 = vmatpush1.msra.mxu0 0.0
    %500 = vmatprep.subr.mxu0 0.0
    %501 = vmatpush1.msra.mxu0 0.0
    %502 = vmatprep.subr.mxu0 0.0
    %503 = vmatpush1.msra.mxu0 0.0
    %504 = vmatprep.subr.mxu0 0.0
    %505 = vmatpush1.msra.mxu0 0.0
    %506 = vmatprep.subr.mxu0 0.0
    %507 = vmatpush1.msra.mxu0 0.0
    %508 = vmatprep.subr.mxu0 0.0
    %509 = vmatpush1.msra.mxu0 0.0
    %510 = vmatprep.subr.mxu0 0.0
    %511 = vmatpush1.msra.mxu0 0.0
    %512 = vmatprep.subr.mxu0 0.0
    %513 = vmatpush1.msra.mxu0 0.0
    %514 = vmatprep.subr.mxu0 0.0
    %515 = vmatpush1.msra.mxu0 0.0
    %516 = vmatprep.subr.mxu0 0.0
    %517 = vmatpush1.msra.mxu0 0.0
    %518 = vmatprep.subr.mxu0 0.0
    %519 = vmatpush1.msra.mxu0 0.0
    %520 = vmatprep.subr.mxu0 0.0
    %521 = vmatpush1.msra.mxu0 0.0
    %522 = vmatprep.subr.mxu0 0.0
    %523 = vmatpush1.msra.mxu0 0.0
    %524 = vmatprep.subr.mxu0 0.0
    %525 = vmatpush1.msra.mxu0 0.0
    %526 = vmatprep.subr.mxu0 0.0
    %527 = vmatpush1.msra.mxu0 0.0
    %528 = vmatprep.subr.mxu0 0.0
    %529 = vmatpush1.msra.mxu0 0.0
    %530 = vmatprep.subr.mxu0 0.0
    %531 = vmatpush1.msra.mxu0 0.0
    %532 = vmatprep.subr.mxu0 0.0
    %533 = vmatpush1.msra.mxu0 0.0
    %534 = vmatprep.subr.mxu0 0.0
    %535 = vmatpush1.msra.mxu0 0.0
    %536 = vmatprep.subr.mxu0 0.0
    %537 = vmatpush1.msra.mxu0 0.0
    %538 = vmatprep.subr.mxu0 0.0
    %539 = vmatpush1.msra.mxu0 0.0
    %540 = vmatprep.subr.mxu0 0.0
    %541 = vmatpush1.msra.mxu0 0.0
    %542 = vmatprep.subr.mxu0 0.0
    %543 = vmatpush1.msra.mxu0 0.0
    %544 = vmatprep.subr.mxu0 0.0
    %545 = vmatpush1.msra.mxu0 0.0
    %546 = vmatprep.subr.mxu0 0.0
    %547 = vmatpush1.msra.mxu0 0.0
    %548 = vmatprep.subr.mxu0 0.0
    %549 = vmatpush1.msra.mxu0 0.0
    %550 = vmatprep.subr.mxu0 0.0
    %551 = vmatpush1.msra.mxu0 0.0
    %552 = vmatprep.mubr.f32.mxu0 0.0
    %v553 = vand.u32 %v58, 4294901760
    %554 = vmatmul.mubr.f32.gmra.mrb[0].mxu0 %v553
    %v555 = vpop.f32.mrb[0].mxu0
    %v556 = vadd.f32 %v477, %v555
    %v557 = vpop.f32.mrb[0].mxu0
    %558 = vmatprep.mubr.f32.mxu0 0.0
    %v559 = vand.u32 %v61, 4294901760
    %560 = vmatmul.mubr.f32.gmra.mrb[0].mxu0 %v559
    %v561 = vpop.f32.mrb[0].mxu0
    %v562 = vadd.f32 %v483, %v561
    %v563 = vpop.f32.mrb[0].mxu0
    %564 = vdwg.mxu0
    %v565 = vld [vmem:[%s5] sm:$0xff]
    %v566 = vld [vmem:[%s5 + $0x8] sm:$0xff]
    %v568 = vsel %vm56, %v52, 0
    %v571 = vsel %vm56, %v53, 0
    %573 = vmatprep.subr.mxu0 0.0
    %v574 = vand.u32 %v565, 4294901760
    %575 = vmatpush1.msra.mxu0 %v574
    %576 = vmatprep.subr.mxu0 0.0
    %v577 = vand.u32 %v566, 4294901760
    %578 = vmatpush1.msra.mxu0 %v577
    %579 = vmatprep.subr.mxu0 0.0
    %580 = vmatpush1.msra.mxu0 0.0
    %581 = vmatprep.subr.mxu0 0.0
    %582 = vmatpush1.msra.mxu0 0.0
    %583 = vmatprep.subr.mxu0 0.0
    %584 = vmatpush1.msra.mxu0 0.0
    %585 = vmatprep.subr.mxu0 0.0
    %586 = vmatpush1.msra.mxu0 0.0
    %587 = vmatprep.subr.mxu0 0.0
    %588 = vmatpush1.msra.mxu0 0.0
    %589 = vmatprep.subr.mxu0 0.0
    %590 = vmatpush1.msra.mxu0 0.0
    %591 = vmatprep.subr.mxu0 0.0
    %592 = vmatpush1.msra.mxu0 0.0
    %593 = vmatprep.subr.mxu0 0.0
    %594 = vmatpush1.msra.mxu0 0.0
    %595 = vmatprep.subr.mxu0 0.0
    %596 = vmatpush1.msra.mxu0 0.0
    %597 = vmatprep.subr.mxu0 0.0
    %598 = vmatpush1.msra.mxu0 0.0
    %599 = vmatprep.subr.mxu0 0.0
    %600 = vmatpush1.msra.mxu0 0.0
    %601 = vmatprep.subr.mxu0 0.0
    %602 = vmatpush1.msra.mxu0 0.0
    %603 = vmatprep.subr.mxu0 0.0
    %604 = vmatpush1.msra.mxu0 0.0
    %605 = vmatprep.subr.mxu0 0.0
    %606 = vmatpush1.msra.mxu0 0.0
    %607 = vmatprep.subr.mxu0 0.0
    %608 = vmatpush1.msra.mxu0 0.0
    %609 = vmatprep.subr.mxu0 0.0
    %610 = vmatpush1.msra.mxu0 0.0
    %611 = vmatprep.subr.mxu0 0.0
    %612 = vmatpush1.msra.mxu0 0.0
    %613 = vmatprep.subr.mxu0 0.0
    %614 = vmatpush1.msra.mxu0 0.0
    %615 = vmatprep.subr.mxu0 0.0
    %616 = vmatpush1.msra.mxu0 0.0
    %617 = vmatprep.subr.mxu0 0.0
    %618 = vmatpush1.msra.mxu0 0.0
    %619 = vmatprep.subr.mxu0 0.0
    %620 = vmatpush1.msra.mxu0 0.0
    %621 = vmatprep.subr.mxu0 0.0
    %622 = vmatpush1.msra.mxu0 0.0
    %623 = vmatprep.subr.mxu0 0.0
    %624 = vmatpush1.msra.mxu0 0.0
    %625 = vmatprep.subr.mxu0 0.0
    %626 = vmatpush1.msra.mxu0 0.0
    %627 = vmatprep.subr.mxu0 0.0
    %628 = vmatpush1.msra.mxu0 0.0
    %629 = vmatprep.subr.mxu0 0.0
    %630 = vmatpush1.msra.mxu0 0.0
    %631 = vmatprep.subr.mxu0 0.0
    %632 = vmatpush1.msra.mxu0 0.0
    %633 = vmatprep.subr.mxu0 0.0
    %634 = vmatpush1.msra.mxu0 0.0
    %635 = vmatprep.subr.mxu0 0.0
    %636 = vmatpush1.msra.mxu0 0.0
    %637 = vmatprep.subr.mxu0 0.0
    %638 = vmatpush1.msra.mxu0 0.0
    %639 = vmatprep.mubr.f32.mxu0 0.0
    %v640 = vand.u32 %v568, 4294901760
    %v641 = vsub.f32 %v568, %v640
    %v642 = vand.u32 %v641, 4294901760
    %v643 = vsub.f32 %v641, %v642
    %v644 = vand.u32 %v643, 4294901760
    %645 = vmatmul.mubr.f32.gmra.mrb[0].mxu0 %v644
    %v646 = vpop.f32.mrb[0].mxu0
    %v647 = vadd.f32 0.0, %v646
    %v648 = vpop.f32.mrb[0].mxu0
    %649 = vmatprep.mubr.f32.mxu0 0.0
    %v650 = vand.u32 %v571, 4294901760
    %v651 = vsub.f32 %v571, %v650
    %v652 = vand.u32 %v651, 4294901760
    %v653 = vsub.f32 %v651, %v652
    %v654 = vand.u32 %v653, 4294901760
    %655 = vmatmul.mubr.f32.gmra.mrb[0].mxu0 %v654
    %v656 = vpop.f32.mrb[0].mxu0
    %v657 = vadd.f32 0.0, %v656
    %v658 = vpop.f32.mrb[0].mxu0
    %659 = vdwg.mxu0
    %660 = vmatprep.subr.mxu0 0.0
    %v661 = vand.u32 %v565, 4294901760
    %v662 = vsub.f32 %v565, %v661
    %v663 = vand.u32 %v662, 4294901760
    %v664 = vsub.f32 %v662, %v663
    %v665 = vand.u32 %v664, 4294901760
    %666 = vmatpush1.msra.mxu0 %v665
    %667 = vmatprep.subr.mxu0 0.0
    %v668 = vand.u32 %v566, 4294901760
    %v669 = vsub.f32 %v566, %v668
    %v670 = vand.u32 %v669, 4294901760
    %v671 = vsub.f32 %v669, %v670
    %v672 = vand.u32 %v671, 4294901760
    %673 = vmatpush1.msra.mxu0 %v672
    %674 = vmatprep.subr.mxu0 0.0
    %675 = vmatpush1.msra.mxu0 0.0
    %676 = vmatprep.subr.mxu0 0.0
    %677 = vmatpush1.msra.mxu0 0.0
    %678 = vmatprep.subr.mxu0 0.0
    %679 = vmatpush1.msra.mxu0 0.0
    %680 = vmatprep.subr.mxu0 0.0
    %681 = vmatpush1.msra.mxu0 0.0
    %682 = vmatprep.subr.mxu0 0.0
    %683 = vmatpush1.msra.mxu0 0.0
    %684 = vmatprep.subr.mxu0 0.0
    %685 = vmatpush1.msra.mxu0 0.0
    %686 = vmatprep.subr.mxu0 0.0
    %687 = vmatpush1.msra.mxu0 0.0
    %688 = vmatprep.subr.mxu0 0.0
    %689 = vmatpush1.msra.mxu0 0.0
    %690 = vmatprep.subr.mxu0 0.0
    %691 = vmatpush1.msra.mxu0 0.0
    %692 = vmatprep.subr.mxu0 0.0
    %693 = vmatpush1.msra.mxu0 0.0
    %694 = vmatprep.subr.mxu0 0.0
    %695 = vmatpush1.msra.mxu0 0.0
    %696 = vmatprep.subr.mxu0 0.0
    %697 = vmatpush1.msra.mxu0 0.0
    %698 = vmatprep.subr.mxu0 0.0
    %699 = vmatpush1.msra.mxu0 0.0
    %700 = vmatprep.subr.mxu0 0.0
    %701 = vmatpush1.msra.mxu0 0.0
    %702 = vmatprep.subr.mxu0 0.0
    %703 = vmatpush1.msra.mxu0 0.0
    %704 = vmatprep.subr.mxu0 0.0
    %705 = vmatpush1.msra.mxu0 0.0
    %706 = vmatprep.subr.mxu0 0.0
    %707 = vmatpush1.msra.mxu0 0.0
    %708 = vmatprep.subr.mxu0 0.0
    %709 = vmatpush1.msra.mxu0 0.0
    %710 = vmatprep.subr.mxu0 0.0
    %711 = vmatpush1.msra.mxu0 0.0
    %712 = vmatprep.subr.mxu0 0.0
    %713 = vmatpush1.msra.mxu0 0.0
    %714 = vmatprep.subr.mxu0 0.0
    %715 = vmatpush1.msra.mxu0 0.0
    %716 = vmatprep.subr.mxu0 0.0
    %717 = vmatpush1.msra.mxu0 0.0
    %718 = vmatprep.subr.mxu0 0.0
    %719 = vmatpush1.msra.mxu0 0.0
    %720 = vmatprep.subr.mxu0 0.0
    %721 = vmatpush1.msra.mxu0 0.0
    %722 = vmatprep.subr.mxu0 0.0
    %723 = vmatpush1.msra.mxu0 0.0
    %724 = vmatprep.subr.mxu0 0.0
    %725 = vmatpush1.msra.mxu0 0.0
    %726 = vmatprep.subr.mxu0 0.0
    %727 = vmatpush1.msra.mxu0 0.0
    %728 = vmatprep.subr.mxu0 0.0
    %729 = vmatpush1.msra.mxu0 0.0
    %730 = vmatprep.subr.mxu0 0.0
    %731 = vmatpush1.msra.mxu0 0.0
    %732 = vmatprep.subr.mxu0 0.0
    %733 = vmatpush1.msra.mxu0 0.0
    %734 = vmatprep.mubr.f32.mxu0 0.0
    %v735 = vand.u32 %v568, 4294901760
    %736 = vmatmul.mubr.f32.gmra.mrb[0].mxu0 %v735
    %v737 = vpop.f32.mrb[0].mxu0
    %v738 = vadd.f32 %v647, %v737
    %v739 = vpop.f32.mrb[0].mxu0
    %740 = vmatprep.mubr.f32.mxu0 0.0
    %v741 = vand.u32 %v571, 4294901760
    %742 = vmatmul.mubr.f32.gmra.mrb[0].mxu0 %v741
    %v743 = vpop.f32.mrb[0].mxu0
    %v744 = vadd.f32 %v657, %v743
    %v745 = vpop.f32.mrb[0].mxu0
    %746 = vdwg.mxu0
    %747 = vmatprep.subr.mxu0 0.0
    %v748 = vand.u32 %v565, 4294901760
    %v749 = vsub.f32 %v565, %v748
    %750 = vmatpush1.msra.mxu0 %v749
    %751 = vmatprep.subr.mxu0 0.0
    %v752 = vand.u32 %v566, 4294901760
    %v753 = vsub.f32 %v566, %v752
    %754 = vmatpush1.msra.mxu0 %v753
    %755 = vmatprep.subr.mxu0 0.0
    %756 = vmatpush1.msra.mxu0 0.0
    %757 = vmatprep.subr.mxu0 0.0
    %758 = vmatpush1.msra.mxu0 0.0
    %759 = vmatprep.subr.mxu0 0.0
    %760 = vmatpush1.msra.mxu0 0.0
    %761 = vmatprep.subr.mxu0 0.0
    %762 = vmatpush1.msra.mxu0 0.0
    %763 = vmatprep.subr.mxu0 0.0
    %764 = vmatpush1.msra.mxu0 0.0
    %765 = vmatprep.subr.mxu0 0.0
    %766 = vmatpush1.msra.mxu0 0.0
    %767 = vmatprep.subr.mxu0 0.0
    %768 = vmatpush1.msra.mxu0 0.0
    %769 = vmatprep.subr.mxu0 0.0
    %770 = vmatpush1.msra.mxu0 0.0
    %771 = vmatprep.subr.mxu0 0.0
    %772 = vmatpush1.msra.mxu0 0.0
    %773 = vmatprep.subr.mxu0 0.0
    %774 = vmatpush1.msra.mxu0 0.0
    %775 = vmatprep.subr.mxu0 0.0
    %776 = vmatpush1.msra.mxu0 0.0
    %777 = vmatprep.subr.mxu0 0.0
    %778 = vmatpush1.msra.mxu0 0.0
    %779 = vmatprep.subr.mxu0 0.0
    %780 = vmatpush1.msra.mxu0 0.0
    %781 = vmatprep.subr.mxu0 0.0
    %782 = vmatpush1.msra.mxu0 0.0
    %783 = vmatprep.subr.mxu0 0.0
    %784 = vmatpush1.msra.mxu0 0.0
    %785 = vmatprep.subr.mxu0 0.0
    %786 = vmatpush1.msra.mxu0 0.0
    %787 = vmatprep.subr.mxu0 0.0
    %788 = vmatpush1.msra.mxu0 0.0
    %789 = vmatprep.subr.mxu0 0.0
    %790 = vmatpush1.msra.mxu0 0.0
    %791 = vmatprep.subr.mxu0 0.0
    %792 = vmatpush1.msra.mxu0 0.0
    %793 = vmatprep.subr.mxu0 0.0
    %794 = vmatpush1.msra.mxu0 0.0
    %795 = vmatprep.subr.mxu0 0.0
    %796 = vmatpush1.msra.mxu0 0.0
    %797 = vmatprep.subr.mxu0 0.0
    %798 = vmatpush1.msra.mxu0 0.0
    %799 = vmatprep.subr.mxu0 0.0
    %800 = vmatpush1.msra.mxu0 0.0
    %801 = vmatprep.subr.mxu0 0.0
    %802 = vmatpush1.msra.mxu0 0.0
    %803 = vmatprep.subr.mxu0 0.0
    %804 = vmatpush1.msra.mxu0 0.0
    %805 = vmatprep.subr.mxu0 0.0
    %806 = vmatpush1.msra.mxu0 0.0
    %807 = vmatprep.subr.mxu0 0.0
    %808 = vmatpush1.msra.mxu0 0.0
    %809 = vmatprep.subr.mxu0 0.0
    %810 = vmatpush1.msra.mxu0 0.0
    %811 = vmatprep.subr.mxu0 0.0
    %812 = vmatpush1.msra.mxu0 0.0
    %813 = vmatprep.subr.mxu0 0.0
    %814 = vmatpush1.msra.mxu0 0.0
    %815 = vmatprep.mubr.f32.mxu0 0.0
    %v816 = vand.u32 %v568, 4294901760
    %v817 = vsub.f32 %v568, %v816
    %818 = vmatmul.mubr.f32.gmra.mrb[0].mxu0 %v817
    %v819 = vpop.f32.mrb[0].mxu0
    %v820 = vadd.f32 %v738, %v819
    %v821 = vpop.f32.mrb[0].mxu0
    %822 = vmatprep.mubr.f32.mxu0 0.0
    %v823 = vand.u32 %v571, 4294901760
    %v824 = vsub.f32 %v571, %v823
    %825 = vmatmul.mubr.f32.gmra.mrb[0].mxu0 %v824
    %v826 = vpop.f32.mrb[0].mxu0
    %v827 = vadd.f32 %v744, %v826
    %v828 = vpop.f32.mrb[0].mxu0
    %829 = vdwg.mxu0
    %830 = vmatprep.subr.mxu0 0.0
    %v831 = vand.u32 %v565, 4294901760
    %832 = vmatpush1.msra.mxu0 %v831
    %833 = vmatprep.subr.mxu0 0.0
    %v834 = vand.u32 %v566, 4294901760
    %835 = vmatpush1.msra.mxu0 %v834
    %836 = vmatprep.subr.mxu0 0.0
    %837 = vmatpush1.msra.mxu0 0.0
    %838 = vmatprep.subr.mxu0 0.0
    %839 = vmatpush1.msra.mxu0 0.0
    %840 = vmatprep.subr.mxu0 0.0
    %841 = vmatpush1.msra.mxu0 0.0
    %842 = vmatprep.subr.mxu0 0.0
    %843 = vmatpush1.msra.mxu0 0.0
    %844 = vmatprep.subr.mxu0 0.0
    %845 = vmatpush1.msra.mxu0 0.0
    %846 = vmatprep.subr.mxu0 0.0
    %847 = vmatpush1.msra.mxu0 0.0
    %848 = vmatprep.subr.mxu0 0.0
    %849 = vmatpush1.msra.mxu0 0.0
    %850 = vmatprep.subr.mxu0 0.0
    %851 = vmatpush1.msra.mxu0 0.0
    %852 = vmatprep.subr.mxu0 0.0
    %853 = vmatpush1.msra.mxu0 0.0
    %854 = vmatprep.subr.mxu0 0.0
    %855 = vmatpush1.msra.mxu0 0.0
    %856 = vmatprep.subr.mxu0 0.0
    %857 = vmatpush1.msra.mxu0 0.0
    %858 = vmatprep.subr.mxu0 0.0
    %859 = vmatpush1.msra.mxu0 0.0
    %860 = vmatprep.subr.mxu0 0.0
    %861 = vmatpush1.msra.mxu0 0.0
    %862 = vmatprep.subr.mxu0 0.0
    %863 = vmatpush1.msra.mxu0 0.0
    %864 = vmatprep.subr.mxu0 0.0
    %865 = vmatpush1.msra.mxu0 0.0
    %866 = vmatprep.subr.mxu0 0.0
    %867 = vmatpush1.msra.mxu0 0.0
    %868 = vmatprep.subr.mxu0 0.0
    %869 = vmatpush1.msra.mxu0 0.0
    %870 = vmatprep.subr.mxu0 0.0
    %871 = vmatpush1.msra.mxu0 0.0
    %872 = vmatprep.subr.mxu0 0.0
    %873 = vmatpush1.msra.mxu0 0.0
    %874 = vmatprep.subr.mxu0 0.0
    %875 = vmatpush1.msra.mxu0 0.0
    %876 = vmatprep.subr.mxu0 0.0
    %877 = vmatpush1.msra.mxu0 0.0
    %878 = vmatprep.subr.mxu0 0.0
    %879 = vmatpush1.msra.mxu0 0.0
    %880 = vmatprep.subr.mxu0 0.0
    %881 = vmatpush1.msra.mxu0 0.0
    %882 = vmatprep.subr.mxu0 0.0
    %883 = vmatpush1.msra.mxu0 0.0
    %884 = vmatprep.subr.mxu0 0.0
    %885 = vmatpush1.msra.mxu0 0.0
    %886 = vmatprep.subr.mxu0 0.0
    %887 = vmatpush1.msra.mxu0 0.0
    %888 = vmatprep.subr.mxu0 0.0
    %889 = vmatpush1.msra.mxu0 0.0
    %890 = vmatprep.subr.mxu0 0.0
    %891 = vmatpush1.msra.mxu0 0.0
    %892 = vmatprep.subr.mxu0 0.0
    %893 = vmatpush1.msra.mxu0 0.0
    %894 = vmatprep.subr.mxu0 0.0
    %895 = vmatpush1.msra.mxu0 0.0
    %896 = vmatprep.mubr.f32.mxu0 0.0
    %v897 = vand.u32 %v568, 4294901760
    %v898 = vsub.f32 %v568, %v897
    %v899 = vand.u32 %v898, 4294901760
    %900 = vmatmul.mubr.f32.gmra.mrb[0].mxu0 %v899
    %v901 = vpop.f32.mrb[0].mxu0
    %v902 = vadd.f32 %v820, %v901
    %v903 = vpop.f32.mrb[0].mxu0
    %904 = vmatprep.mubr.f32.mxu0 0.0
    %v905 = vand.u32 %v571, 4294901760
    %v906 = vsub.f32 %v571, %v905
    %v907 = vand.u32 %v906, 4294901760
    %908 = vmatmul.mubr.f32.gmra.mrb[0].mxu0 %v907
    %v909 = vpop.f32.mrb[0].mxu0
    %v910 = vadd.f32 %v827, %v909
    %v911 = vpop.f32.mrb[0].mxu0
    %912 = vdwg.mxu0
    %913 = vmatprep.subr.mxu0 0.0
    %v914 = vand.u32 %v565, 4294901760
    %v915 = vsub.f32 %v565, %v914
    %v916 = vand.u32 %v915, 4294901760
    %917 = vmatpush1.msra.mxu0 %v916
    %918 = vmatprep.subr.mxu0 0.0
    %v919 = vand.u32 %v566, 4294901760
    %v920 = vsub.f32 %v566, %v919
    %v921 = vand.u32 %v920, 4294901760
    %922 = vmatpush1.msra.mxu0 %v921
    %923 = vmatprep.subr.mxu0 0.0
    %924 = vmatpush1.msra.mxu0 0.0
    %925 = vmatprep.subr.mxu0 0.0
    %926 = vmatpush1.msra.mxu0 0.0
    %927 = vmatprep.subr.mxu0 0.0
    %928 = vmatpush1.msra.mxu0 0.0
    %929 = vmatprep.subr.mxu0 0.0
    %930 = vmatpush1.msra.mxu0 0.0
    %931 = vmatprep.subr.mxu0 0.0
    %932 = vmatpush1.msra.mxu0 0.0
    %933 = vmatprep.subr.mxu0 0.0
    %934 = vmatpush1.msra.mxu0 0.0
    %935 = vmatprep.subr.mxu0 0.0
    %936 = vmatpush1.msra.mxu0 0.0
    %937 = vmatprep.subr.mxu0 0.0
    %938 = vmatpush1.msra.mxu0 0.0
    %939 = vmatprep.subr.mxu0 0.0
    %940 = vmatpush1.msra.mxu0 0.0
    %941 = vmatprep.subr.mxu0 0.0
    %942 = vmatpush1.msra.mxu0 0.0
    %943 = vmatprep.subr.mxu0 0.0
    %944 = vmatpush1.msra.mxu0 0.0
    %945 = vmatprep.subr.mxu0 0.0
    %946 = vmatpush1.msra.mxu0 0.0
    %947 = vmatprep.subr.mxu0 0.0
    %948 = vmatpush1.msra.mxu0 0.0
    %949 = vmatprep.subr.mxu0 0.0
    %950 = vmatpush1.msra.mxu0 0.0
    %951 = vmatprep.subr.mxu0 0.0
    %952 = vmatpush1.msra.mxu0 0.0
    %953 = vmatprep.subr.mxu0 0.0
    %954 = vmatpush1.msra.mxu0 0.0
    %955 = vmatprep.subr.mxu0 0.0
    %956 = vmatpush1.msra.mxu0 0.0
    %957 = vmatprep.subr.mxu0 0.0
    %958 = vmatpush1.msra.mxu0 0.0
    %959 = vmatprep.subr.mxu0 0.0
    %960 = vmatpush1.msra.mxu0 0.0
    %961 = vmatprep.subr.mxu0 0.0
    %962 = vmatpush1.msra.mxu0 0.0
    %963 = vmatprep.subr.mxu0 0.0
    %964 = vmatpush1.msra.mxu0 0.0
    %965 = vmatprep.subr.mxu0 0.0
    %966 = vmatpush1.msra.mxu0 0.0
    %967 = vmatprep.subr.mxu0 0.0
    %968 = vmatpush1.msra.mxu0 0.0
    %969 = vmatprep.subr.mxu0 0.0
    %970 = vmatpush1.msra.mxu0 0.0
    %971 = vmatprep.subr.mxu0 0.0
    %972 = vmatpush1.msra.mxu0 0.0
    %973 = vmatprep.subr.mxu0 0.0
    %974 = vmatpush1.msra.mxu0 0.0
    %975 = vmatprep.subr.mxu0 0.0
    %976 = vmatpush1.msra.mxu0 0.0
    %977 = vmatprep.subr.mxu0 0.0
    %978 = vmatpush1.msra.mxu0 0.0
    %979 = vmatprep.subr.mxu0 0.0
    %980 = vmatpush1.msra.mxu0 0.0
    %981 = vmatprep.subr.mxu0 0.0
    %982 = vmatpush1.msra.mxu0 0.0
    %983 = vmatprep.mubr.f32.mxu0 0.0
    %v984 = vand.u32 %v568, 4294901760
    %985 = vmatmul.mubr.f32.gmra.mrb[0].mxu0 %v984
    %v986 = vpop.f32.mrb[0].mxu0
    %v987 = vadd.f32 %v902, %v986
    %v988 = vpop.f32.mrb[0].mxu0
    %989 = vmatprep.mubr.f32.mxu0 0.0
    %v990 = vand.u32 %v571, 4294901760
    %991 = vmatmul.mubr.f32.gmra.mrb[0].mxu0 %v990
    %v992 = vpop.f32.mrb[0].mxu0
    %v993 = vadd.f32 %v910, %v992
    %v994 = vpop.f32.mrb[0].mxu0
    %995 = vdwg.mxu0
    %996 = vmatprep.subr.mxu0 0.0
    %v997 = vand.u32 %v565, 4294901760
    %998 = vmatpush1.msra.mxu0 %v997
    %999 = vmatprep.subr.mxu0 0.0
    %v1000 = vand.u32 %v566, 4294901760
    %1001 = vmatpush1.msra.mxu0 %v1000
    %1002 = vmatprep.subr.mxu0 0.0
    %1003 = vmatpush1.msra.mxu0 0.0
    %1004 = vmatprep.subr.mxu0 0.0
    %1005 = vmatpush1.msra.mxu0 0.0
    %1006 = vmatprep.subr.mxu0 0.0
    %1007 = vmatpush1.msra.mxu0 0.0
    %1008 = vmatprep.subr.mxu0 0.0
    %1009 = vmatpush1.msra.mxu0 0.0
    %1010 = vmatprep.subr.mxu0 0.0
    %1011 = vmatpush1.msra.mxu0 0.0
    %1012 = vmatprep.subr.mxu0 0.0
    %1013 = vmatpush1.msra.mxu0 0.0
    %1014 = vmatprep.subr.mxu0 0.0
    %1015 = vmatpush1.msra.mxu0 0.0
    %1016 = vmatprep.subr.mxu0 0.0
    %1017 = vmatpush1.msra.mxu0 0.0
    %1018 = vmatprep.subr.mxu0 0.0
    %1019 = vmatpush1.msra.mxu0 0.0
    %1020 = vmatprep.subr.mxu0 0.0
    %1021 = vmatpush1.msra.mxu0 0.0
    %1022 = vmatprep.subr.mxu0 0.0
    %1023 = vmatpush1.msra.mxu0 0.0
    %1024 = vmatprep.subr.mxu0 0.0
    %1025 = vmatpush1.msra.mxu0 0.0
    %1026 = vmatprep.subr.mxu0 0.0
    %1027 = vmatpush1.msra.mxu0 0.0
    %1028 = vmatprep.subr.mxu0 0.0
    %1029 = vmatpush1.msra.mxu0 0.0
    %1030 = vmatprep.subr.mxu0 0.0
    %1031 = vmatpush1.msra.mxu0 0.0
    %1032 = vmatprep.subr.mxu0 0.0
    %1033 = vmatpush1.msra.mxu0 0.0
    %1034 = vmatprep.subr.mxu0 0.0
    %1035 = vmatpush1.msra.mxu0 0.0
    %1036 = vmatprep.subr.mxu0 0.0
    %1037 = vmatpush1.msra.mxu0 0.0
    %1038 = vmatprep.subr.mxu0 0.0
    %1039 = vmatpush1.msra.mxu0 0.0
    %1040 = vmatprep.subr.mxu0 0.0
    %1041 = vmatpush1.msra.mxu0 0.0
    %1042 = vmatprep.subr.mxu0 0.0
    %1043 = vmatpush1.msra.mxu0 0.0
    %1044 = vmatprep.subr.mxu0 0.0
    %1045 = vmatpush1.msra.mxu0 0.0
    %1046 = vmatprep.subr.mxu0 0.0
    %1047 = vmatpush1.msra.mxu0 0.0
    %1048 = vmatprep.subr.mxu0 0.0
    %1049 = vmatpush1.msra.mxu0 0.0
    %1050 = vmatprep.subr.mxu0 0.0
    %1051 = vmatpush1.msra.mxu0 0.0
    %1052 = vmatprep.subr.mxu0 0.0
    %1053 = vmatpush1.msra.mxu0 0.0
    %1054 = vmatprep.subr.mxu0 0.0
    %1055 = vmatpush1.msra.mxu0 0.0
    %1056 = vmatprep.subr.mxu0 0.0
    %1057 = vmatpush1.msra.mxu0 0.0
    %1058 = vmatprep.subr.mxu0 0.0
    %1059 = vmatpush1.msra.mxu0 0.0
    %1060 = vmatprep.subr.mxu0 0.0
    %1061 = vmatpush1.msra.mxu0 0.0
    %1062 = vmatprep.mubr.f32.mxu0 0.0
    %v1063 = vand.u32 %v568, 4294901760
    %1064 = vmatmul.mubr.f32.gmra.mrb[0].mxu0 %v1063
    %v1065 = vpop.f32.mrb[0].mxu0
    %v1066 = vadd.f32 %v987, %v1065
    %v1067 = vpop.f32.mrb[0].mxu0
    %1068 = vmatprep.mubr.f32.mxu0 0.0
    %v1069 = vand.u32 %v571, 4294901760
    %1070 = vmatmul.mubr.f32.gmra.mrb[0].mxu0 %v1069
    %v1071 = vpop.f32.mrb[0].mxu0
    %v1072 = vadd.f32 %v993, %v1071
    %v1073 = vpop.f32.mrb[0].mxu0
    %1074 = vdwg.mxu0
    %v1075 = vld [vmem:[%s1] sm:$0xff]
    %v1076 = vld [vmem:[%s1 + $0x8] sm:$0x7f]
    %1077 = vset.pattern.permute.xlu0 0
    %1078 = vperm.xlu0 %1077, %v1075
    %v1079 = vpop.permute.xlu0 %1078
    %1080 = vset.pattern.permute.xlu0 0
    %1081 = vperm.xlu0 %1080, %v1076
    %v1082 = vpop.permute.xlu0 %1081
    %vm1083 = vcmp.eq.s32.totalorder %v25, %v1079
    %vm1084 = vcmp.eq.s32.totalorder %v25, %v1082
    %v1085 = vsel %vm1083, %v556, 0.0
    %v1086 = vsel %vm1084, %v562, 0.0
    %v1087 = vsel %vm56, %v1085, 0.0
    %1088 = vadd.xlane.f32.xlu0 %v1087
    %v1089 = vpop.xlane.xlu0 %1088
    %vm1090 = vcmask 129024
    %v1091 = vsel %vm1090, %v1086, 0.0
    %1092 = vadd.xlane.f32.xlu0 %v1091
    %v1093 = vpop.xlane.xlu0 %1092
    %v1094 = vld [vmem:[%s3] sm:$0xff]
    %v1095 = vld [vmem:[%s3 + $0x8] sm:$0x7f]
    %1096 = vset.pattern.permute.xlu0 0
    %1097 = vperm.xlu0 %1096, %v1094
    %v1098 = vpop.permute.xlu0 %1097
    %1099 = vset.pattern.permute.xlu0 0
    %1100 = vperm.xlu0 %1099, %v1095
    %v1101 = vpop.permute.xlu0 %1100
    %vm1102 = vcmp.eq.s32.totalorder %v25, %v1098
    %vm1103 = vcmp.eq.s32.totalorder %v25, %v1101
    %v1104 = vsel %vm1102, %v1066, 0.0
    %v1105 = vsel %vm1103, %v1072, 0.0
    %v1106 = vsel %vm56, %v1104, 0.0
    %1107 = vadd.xlane.f32.xlu0 %v1106
    %v1108 = vpop.xlane.xlu0 %1107
    %v1109 = vsel %vm1090, %v1105, 0.0
    %1110 = vadd.xlane.f32.xlu0 %v1109
    %v1111 = vpop.xlane.xlu0 %1110
    %v1112 = vsub.f32 %v1089, %v1108
    %v1113 = vsub.f32 %v1093, %v1111
    %v1114 = vmul.f32 %v1112, %v1112
    %v1115 = vmul.f32 %v1113, %v1113
    %vm1116 = vcmask 1046528
    %v1117 = vsel %vm1116, %v1115, 0.0
    %v1118 = vadd.f32 %v1114, %v1117
    %v1119 = vrot.slane %v1118, 4
    %v1120 = vadd.f32 %v1118, %v1119
    %v1121 = vrot.slane %v1120, 2
    %v1122 = vadd.f32 %v1120, %v1121
    %v1123 = vrot.slane %v1122, 1
    %v1124 = vadd.f32 %v1122, %v1123
    %vm1125 = vcmask 0
    %1126 = vst.msk [vmem:[#allocation2] sm:$0x1] %vm1125, %v1124
    // Predicated region
    $region26: #{tpu_custom_call.1} parent=1 // pred_check
      _
    $region27: #{tpu_custom_call.1} parent=1 // pred_check_branch
      %1128 = sbr.rel (0) target = $region29
    $region28: #{tpu_custom_call.1} parent=1 // pred_region
      %s1130 = ssub.s32 16, 16
      %1131 = vsyncadd [#allocation3], %s1130
      %s1133 = sshll.u32 [#allocation2], 4
      %s1134 = int_to_ptr.vmem [resolvable:$true] %s1133
      %1136 = dma.vmem_to_hbm [thread:$0]  %s1134, 16, %s6, [#allocation3]
    $region29: #{tpu_custom_call.1} parent=1 // pred_fallthru
      _
    // Predicated region
    $region30: #{tpu_custom_call.1} parent=1 // pred_check
      _
    $region31: #{tpu_custom_call.1} parent=1 // pred_check_branch
      %1138 = sbr.rel (0) target = $region33
    $region32: #{tpu_custom_call.1} parent=1 // pred_region
      %1139 = dma.done [#allocation3], 16
    $region33: #{tpu_custom_call.1} parent=1 // pred_fallthru
      _
    %1140 = vsyncpa [#allocation3], 1

</llo_original>
